<compile_context>
chip_gen: v5e
topology: v5e:2x2
jax: 0.10.0
libtpu: 0.0.40
codegen_flags: <defaults>
</compile_context>

<pallas_src>
import functools

import jax
import jax.numpy as jnp
from jax.experimental import pallas as pl
from jax.experimental.pallas import tpu as pltpu


def _round_up(v, m):
    return (v + m - 1) // m * m


# ----------------------------------------------------------------------------
# Kernel
# ----------------------------------------------------------------------------
def dynamics_kernel(x_ref, w1_ref, w2_ref, w3_ref, b_ref, o_ref, *,
                    state_dim, h1, h2, out_dim, compute_dtype):
    x = x_ref[...]                       # (TB, S+A) f32 raw [s, a]
    s = x[:, :state_dim]                 # residual term (normalization folded into W1)

    # Packed biases: row 0 -> b1', row 1 -> b2, row 2 -> b3' (zero padded).
    b1 = b_ref[0:1, :h1]
    b2 = b_ref[1:2, :h2]
    b3 = b_ref[2:3, :out_dim]

    # Layer 1 (normalization folded in).
    y = jnp.dot(x.astype(compute_dtype), w1_ref[...],
                preferred_element_type=jnp.float32) + b1
    y = jnp.maximum(y, 0.0)

    # Layer 2.
    y = jnp.dot(y.astype(compute_dtype), w2_ref[...],
                preferred_element_type=jnp.float32) + b2
    y = jnp.maximum(y, 0.0)

    # Layer 3 (output scale / shift / mask folded in) + residual.
    y = jnp.dot(y.astype(compute_dtype), w3_ref[...],
                preferred_element_type=jnp.float32) + b3
    o_ref[...] = (y + s).astype(o_ref.dtype)


# ----------------------------------------------------------------------------
# Host-side parameter folding / packing (done once, outside the kernel)
# ----------------------------------------------------------------------------
def fold_and_pack_params(weights, biases, transforms, *,
                         compute_dtype=jnp.float32):
    """Fold normalization + output transforms into the first/last layer.

    weights: (w1, w2, w3) each (in, out);  biases: (b1, b2, b3)
    transforms: (s_shift, s_scale, a_shift, a_scale, out_shift, out_scale)
    """
    w1, w2, w3 = (w.astype(jnp.float32) for w in weights)
    b1, b2, b3 = (b.astype(jnp.float32) for b in biases)
    s_shift, s_scale, a_shift, a_scale, out_shift, out_scale = (
        t.astype(jnp.float32) for t in transforms)
    eps = jnp.float32(1e-8)

    # x_norm @ W1 + b1 == x_raw @ (W1/scale) + (b1 - (shift/scale) @ W1)
    in_shift = jnp.concatenate([s_shift, a_shift])
    in_scale = jnp.concatenate([s_scale, a_scale]) + eps
    w1f = w1 / in_scale[:, None]
    b1f = b1 - (in_shift / in_scale) @ w1

    # ((h @ W3 + b3) * (out_scale+eps) + out_shift) * mask
    #   == h @ (W3 * c) + (b3*(out_scale+eps) + out_shift) * mask,
    #   with c = (out_scale+eps) * mask   (use_mask=True)
    mask = (out_scale >= 1e-8).astype(jnp.float32)
    c = (out_scale + eps) * mask
    w3f = w3 * c[None, :]
    b3f = (b3 * (out_scale + eps) + out_shift) * mask

    h1, h2, out_dim = b1f.shape[0], b2.shape[0], b3f.shape[0]
    hmax = max(h1, h2, out_dim)
    b_packed = jnp.zeros((3, hmax), jnp.float32)
    b_packed = b_packed.at[0, :h1].set(b1f)
    b_packed = b_packed.at[1, :h2].set(b2)
    b_packed = b_packed.at[2, :out_dim].set(b3f)

    return dict(
        w1=w1f.astype(compute_dtype),
        w2=w2.astype(compute_dtype),
        w3=w3f.astype(compute_dtype),
        b=b_packed,                       # biases stay f32 (added after f32 accum)
        dims=(h1, h2, out_dim),
        compute_dtype=compute_dtype,
    )


# ----------------------------------------------------------------------------
# Wrapper
# ----------------------------------------------------------------------------
def dynamics_forward(s, a, packed, *, block_batch=512):
    B, S = s.shape
    _, A = a.shape
    h1, h2, out_dim = packed["dims"]
    cdt = packed["compute_dtype"]

    # Pre-concat raw [s, a]; normalization lives in the folded weights.
    x = jnp.concatenate([s, a], axis=-1).astype(jnp.float32)

    # Batch tile: multiple of 8 sublanes; pad batch up to a whole number of tiles.
    tb = min(block_batch, _round_up(B, 8))
    bp = _round_up(B, tb)
    if bp != B:
        x = jnp.pad(x, ((0, bp - B), (0, 0)))
    num_tiles = bp // tb

    kernel = functools.partial(
        dynamics_kernel, state_dim=S, h1=h1, h2=h2, out_dim=out_dim,
        compute_dtype=cdt)

    out = pl.pallas_call(
        kernel,
        out_shape=jax.ShapeDtypeStruct((bp, out_dim), jnp.float32),
        grid=(num_tiles,),
        in_specs=[
            pl.BlockSpec((tb, S + A), lambda i: (i, 0)),          # x: batch-tiled
            pl.BlockSpec(packed["w1"].shape, lambda i: (0, 0)),   # weights stay resident
            pl.BlockSpec(packed["w2"].shape, lambda i: (0, 0)),
            pl.BlockSpec(packed["w3"].shape, lambda i: (0, 0)),
            pl.BlockSpec(packed["b"].shape, lambda i: (0, 0)),    # packed biases
        ],
        out_specs=pl.BlockSpec((tb, out_dim), lambda i: (i, 0)),
        compiler_params=pltpu.CompilerParams(
            dimension_semantics=("parallel",)),
    )(x, packed["w1"], packed["w2"], packed["w3"], packed["b"])

    return out[:B]


# ----------------------------------------------------------------------------
# Parameter construction + pure-JAX references
# ----------------------------------------------------------------------------
def make_params(key, state_dim, act_dim, hidden_size):
    """Synthetic params matching DynamicsNet.__init__ shapes.

    PyTorch nn.Linear(in, out) weight is (out, in); we store (in, out).
    Transforms are non-trivial to exercise the folding (one out_scale entry
    is 0 to exercise the use_mask path).
    """
    layer_sizes = (state_dim + act_dim,) + tuple(hidden_size) + (state_dim,)
    keys = jax.random.split(key, 2 * (len(layer_sizes) - 1) + 6)
    weights, biases = [], []
    for i in range(len(layer_sizes) - 1):
        fan_in, fan_out = layer_sizes[i], layer_sizes[i + 1]
        bound = 1.0 / jnp.sqrt(fan_in)
        w = jax.random.uniform(keys[2 * i], (fan_in, fan_out),
                               minval=-bound, maxval=bound, dtype=jnp.float32)
        b = jax.random.uniform(keys[2 * i + 1], (fan_out,),
                               minval=-bound, maxval=bound, dtype=jnp.float32)
        weights.append(w)
        biases.append(b)

    k0 = 2 * (len(layer_sizes) - 1)
    s_shift = jax.random.uniform(keys[k0 + 0], (state_dim,), minval=-1.0, maxval=1.0)
    s_scale = jax.random.uniform(keys[k0 + 1], (state_dim,), minval=0.5, maxval=2.0)
    a_shift = jax.random.uniform(keys[k0 + 2], (act_dim,), minval=-1.0, maxval=1.0)
    a_scale = jax.random.uniform(keys[k0 + 3], (act_dim,), minval=0.5, maxval=2.0)
    out_shift = jax.random.uniform(keys[k0 + 4], (state_dim,), minval=-0.5, maxval=0.5)
    out_scale = jax.random.uniform(keys[k0 + 5], (state_dim,), minval=0.5, maxval=1.5)
    out_scale = out_scale.at[0].set(0.0)   # exercise use_mask

    transforms = (s_shift, s_scale, a_shift, a_scale, out_shift, out_scale)
    return tuple(weights), tuple(biases), transforms


def dynamics_forward_torch_ref(s, a, weights, biases, transforms):
    """Exact PyTorch DynamicsNet.forward semantics (residual=True, use_mask=True)."""
    w1, w2, w3 = weights
    b1, b2, b3 = biases
    s_shift, s_scale, a_shift, a_scale, out_shift, out_scale = transforms
    eps = 1e-8
    s_in = (s - s_shift) / (s_scale + eps)
    a_in = (a - a_shift) / (a_scale + eps)
    x = jnp.concatenate([s_in, a_in], axis=-1)
    h = jax.nn.relu(x @ w1 + b1)
    h = jax.nn.relu(h @ w2 + b2)
    out = h @ w3 + b3
    out = out * (out_scale + eps) + out_shift
    out = out * (out_scale >= 1e-8).astype(out.dtype)
    out = out + s
    return out


def dynamics_forward_folded_ref(s, a, packed):
    """Pure-JAX mirror of the folded kernel math (same operands as the kernel)."""
    cdt = packed["compute_dtype"]
    h1, h2, out_dim = packed["dims"]
    x = jnp.concatenate([s, a], axis=-1).astype(jnp.float32)
    b1 = packed["b"][0, :h1]
    b2 = packed["b"][1, :h2]
    b3 = packed["b"][2, :out_dim]
    y = jnp.dot(x.astype(cdt), packed["w1"], preferred_element_type=jnp.float32) + b1
    y = jnp.maximum(y, 0.0)
    y = jnp.dot(y.astype(cdt), packed["w2"], preferred_element_type=jnp.float32) + b2
    y = jnp.maximum(y, 0.0)
    y = jnp.dot(y.astype(cdt), packed["w3"], preferred_element_type=jnp.float32) + b3
    return y + s


if __name__ == "__main__":
    state_dim, act_dim = 16, 8
    hidden_size = (32, 32)

    key = jax.random.PRNGKey(0)
    k_s, k_a, k_p = jax.random.split(key, 3)

    weights, biases, transforms = make_params(k_p, state_dim, act_dim, hidden_size)
    packed = fold_and_pack_params(weights, biases, transforms)

    # --- small single-tile case -------------------------------------------
    B = 8
    s = jax.random.normal(k_s, (B, state_dim), dtype=jnp.float32)
    a = jax.random.normal(k_a, (B, act_dim), dtype=jnp.float32)

    out = jax.block_until_ready(dynamics_forward(s, a, packed))
    assert out.shape == (B, state_dim)

    ref_folded = dynamics_forward_folded_ref(s, a, packed)
    ref_torch = dynamics_forward_torch_ref(s, a, weights, biases, transforms)
    # Kernel matches its pure-JAX mirror (identical operands).
    assert jnp.allclose(out, ref_folded, atol=1e-5, rtol=1e-5), "kernel vs folded ref"
    # Host-side folding matches the exact PyTorch-semantics forward.
    assert jnp.allclose(ref_folded, ref_torch, atol=1e-5, rtol=1e-5), "folded vs torch ref"

    # --- gridded / padded path (grid=(3,), batch padded 40 -> 48) ----------
    B2 = 40
    s2 = jax.random.normal(jax.random.fold_in(k_s, 1), (B2, state_dim), jnp.float32)
    a2 = jax.random.normal(jax.random.fold_in(k_a, 1), (B2, act_dim), jnp.float32)
    out2 = jax.block_until_ready(dynamics_forward(s2, a2, packed, block_batch=16))
    ref2 = dynamics_forward_folded_ref(s2, a2, packed)
    assert out2.shape == (B2, state_dim)
    assert jnp.allclose(out2, ref2, atol=1e-5, rtol=1e-5), "gridded path mismatch"

    # --- bf16 matmul-operand path (v6e/v7x MXU native), f32 accumulation ---
    packed_bf16 = fold_and_pack_params(weights, biases, transforms,
                                       compute_dtype=jnp.bfloat16)
    out_bf16 = jax.block_until_ready(dynamics_forward(s, a, packed_bf16))
    ref_bf16 = dynamics_forward_folded_ref(s, a, packed_bf16)
    assert jnp.allclose(out_bf16, ref_bf16, atol=1e-2, rtol=1e-2), "bf16 path mismatch"

    print("KERNEL_OK")
</pallas_src>

<mosaic_0001>
module attributes {stable_mosaic.version = 11 : i64} {
  func.func @dynamics_kernel(%arg0: i32, %arg1: memref<8x24xf32, #tpu.memory_space<vmem>>, %arg2: memref<24x32xf32, #tpu.memory_space<vmem>>, %arg3: memref<32x32xf32, #tpu.memory_space<vmem>>, %arg4: memref<32x16xf32, #tpu.memory_space<vmem>>, %arg5: memref<3x32xf32, #tpu.memory_space<vmem>>, %arg6: memref<8x16xf32, #tpu.memory_space<vmem>>) attributes {dimension_semantics = [#tpu.dimension_semantics<parallel>], iteration_bounds = array<i64: 1>, scalar_prefetch = 0 : i64, scratch_operands = 0 : i64, tpu.core_type = #tpu.core_type<tc>, window_params = [{transform_indices = @transform_0, window_bounds = array<i64: 8, 24>}, {pipeline_mode = #tpu.pipeline_mode<synchronous>, transform_indices = @transform_1, window_bounds = array<i64: 24, 32>}, {pipeline_mode = #tpu.pipeline_mode<synchronous>, transform_indices = @transform_2, window_bounds = array<i64: 32, 32>}, {pipeline_mode = #tpu.pipeline_mode<synchronous>, transform_indices = @transform_3, window_bounds = array<i64: 32, 16>}, {pipeline_mode = #tpu.pipeline_mode<synchronous>, transform_indices = @transform_4, window_bounds = array<i64: 3, 32>}, {transform_indices = @transform_5, window_bounds = array<i64: 8, 16>}]} {
    %c0 = arith.constant 0 : index
    %c0_0 = arith.constant 0 : index
    %0 = vector.load %arg1[%c0, %c0_0] : memref<8x24xf32, #tpu.memory_space<vmem>>, vector<8x24xf32>
    %1 = vector.extract_strided_slice %0 {offsets = [0, 0], sizes = [8, 16], strides = [1, 1]} : vector<8x24xf32> to vector<8x16xf32>
    %c0_1 = arith.constant 0 : index
    %c0_2 = arith.constant 0 : index
    %2 = vector.load %arg5[%c0_1, %c0_2] : memref<3x32xf32, #tpu.memory_space<vmem>>, vector<1x32xf32>
    %c1 = arith.constant 1 : index
    %c0_3 = arith.constant 0 : index
    %3 = vector.load %arg5[%c1, %c0_3] : memref<3x32xf32, #tpu.memory_space<vmem>>, vector<1x32xf32>
    %c2 = arith.constant 2 : index
    %c0_4 = arith.constant 0 : index
    %4 = vector.load %arg5[%c2, %c0_4] : memref<3x32xf32, #tpu.memory_space<vmem>>, vector<1x16xf32>
    %c0_5 = arith.constant 0 : index
    %c0_6 = arith.constant 0 : index
    %5 = vector.load %arg2[%c0_5, %c0_6] : memref<24x32xf32, #tpu.memory_space<vmem>>, vector<24x32xf32>
    %cst = arith.constant dense<0.000000e+00> : vector<8x32xf32>
    %6 = tpu.matmul %0, %5, %cst {dimension_numbers = #tpu.dot_dimension_numbers<[1], [0], [0], [1], [0, 0, 1, 1], [], []>} : vector<8x24xf32>, vector<24x32xf32>, vector<8x32xf32> -> vector<8x32xf32>
    %7 = vector.broadcast %2 : vector<1x32xf32> to vector<8x32xf32>
    %8 = arith.addf %6, %7 : vector<8x32xf32>
    %cst_7 = arith.constant 0.000000e+00 : f32
    %9 = vector.broadcast %cst_7 : f32 to vector<8x32xf32>
    %10 = arith.maximumf %8, %9 : vector<8x32xf32>
    %c0_8 = arith.constant 0 : index
    %c0_9 = arith.constant 0 : index
    %11 = vector.load %arg3[%c0_8, %c0_9] : memref<32x32xf32, #tpu.memory_space<vmem>>, vector<32x32xf32>
    %cst_10 = arith.constant dense<0.000000e+00> : vector<8x32xf32>
    %12 = tpu.matmul %10, %11, %cst_10 {dimension_numbers = #tpu.dot_dimension_numbers<[1], [0], [0], [1], [0, 0, 1, 1], [], []>} : vector<8x32xf32>, vector<32x32xf32>, vector<8x32xf32> -> vector<8x32xf32>
    %13 = vector.broadcast %3 : vector<1x32xf32> to vector<8x32xf32>
    %14 = arith.addf %12, %13 : vector<8x32xf32>
    %cst_11 = arith.constant 0.000000e+00 : f32
    %15 = vector.broadcast %cst_11 : f32 to vector<8x32xf32>
    %16 = arith.maximumf %14, %15 : vector<8x32xf32>
    %c0_12 = arith.constant 0 : index
    %c0_13 = arith.constant 0 : index
    %17 = vector.load %arg4[%c0_12, %c0_13] : memref<32x16xf32, #tpu.memory_space<vmem>>, vector<32x16xf32>
    %cst_14 = arith.constant dense<0.000000e+00> : vector<8x16xf32>
    %18 = tpu.matmul %16, %17, %cst_14 {dimension_numbers = #tpu.dot_dimension_numbers<[1], [0], [0], [1], [0, 0, 1, 1], [], []>} : vector<8x32xf32>, vector<32x16xf32>, vector<8x16xf32> -> vector<8x16xf32>
    %19 = vector.broadcast %4 : vector<1x16xf32> to vector<8x16xf32>
    %20 = arith.addf %18, %19 : vector<8x16xf32>
    %21 = arith.addf %20, %1 : vector<8x16xf32>
    %c0_15 = arith.constant 0 : index
    %c0_16 = arith.constant 0 : index
    %22 = vector.load %arg6[%c0_15, %c0_16] : memref<8x16xf32, #tpu.memory_space<vmem>>, vector<8x16xf32>
    tpu.vector_store %arg6[%c0_15, %c0_16], %21 {strides = array<i32>} : memref<8x16xf32, #tpu.memory_space<vmem>>, vector<8x16xf32>,
    return
  }
  func.func @transform_0(%arg0: i32) -> (i32, i32) {
    %c0_i32 = arith.constant 0 : i32
    %c0_i32_0 = arith.constant 0 : i32
    return %arg0, %c0_i32 : i32, i32
  }
  func.func @transform_1(%arg0: i32) -> (i32, i32) {
    %c0_i32 = arith.constant 0 : i32
    %c0_i32_0 = arith.constant 0 : i32
    %c0_i32_1 = arith.constant 0 : i32
    return %c0_i32, %c0_i32_0 : i32, i32
  }
  func.func @transform_2(%arg0: i32) -> (i32, i32) {
    %c0_i32 = arith.constant 0 : i32
    %c0_i32_0 = arith.constant 0 : i32
    %c0_i32_1 = arith.constant 0 : i32
    return %c0_i32, %c0_i32_0 : i32, i32
  }
  func.func @transform_3(%arg0: i32) -> (i32, i32) {
    %c0_i32 = arith.constant 0 : i32
    %c0_i32_0 = arith.constant 0 : i32
    %c0_i32_1 = arith.constant 0 : i32
    return %c0_i32, %c0_i32_0 : i32, i32
  }
  func.func @transform_4(%arg0: i32) -> (i32, i32) {
    %c0_i32 = arith.constant 0 : i32
    %c0_i32_0 = arith.constant 0 : i32
    %c0_i32_1 = arith.constant 0 : i32
    return %c0_i32, %c0_i32_0 : i32, i32
  }
  func.func @transform_5(%arg0: i32) -> (i32, i32) {
    %c0_i32 = arith.constant 0 : i32
    %c0_i32_0 = arith.constant 0 : i32
    return %arg0, %c0_i32 : i32, i32
  }
}

</mosaic_0001>

<llo_original>
// kernel: tpu_custom_call.1
$region0: #{tpu_custom_call.1}
  #allocation0 [shape = 'u32[]', space=smem, size = 0x4, offset = 0x4, fixed_abs, tag = 'smem constant byte address 0x4 - core index']
  #allocation1 [shape = 'u32[72,128]{1,0:T(1,128)}', space=vmem, size = 0x9000, scoped, tag = 'internal scratch']
  %s0 = inlined_call_operand.vmem [shape: f32[8,24], index: 0, kind: input, shape index: {}]
  %s1 = inlined_call_operand.hbm [shape: f32[24,32], index: 1, kind: input, shape index: {}]
  %s2 = inlined_call_operand.vmem [shape: f32[32,32], index: 2, kind: input, shape index: {}]
  %s3 = inlined_call_operand.vmem [shape: f32[32,16], index: 3, kind: input, shape index: {}]
  %s4 = inlined_call_operand.vmem [shape: f32[3,32], index: 4, kind: input, shape index: {}]
  %s5 = inlined_call_operand.hbm [shape: f32[8,16], index: 5, kind: output, shape index: {}]
  %s6 = sld [smem:[#allocation0]]
  $region34: #{tpu_custom_call.1} parent=0
    _
  %s8 = ssub.s32 1, %s6
  %s9 = scalar_select 0, %s8, %s6
  $region1: #{tpu_custom_call.1} parent=0
    #allocation2 [shape = 'u8[12288]{0}', space=vmem, size = 0x3000, scoped, tag = 'input window, operand 1, single buffered']
    #allocation3 [shape = 's32[1]{0}', space=sflag, size = 0x4, scoped, tag = 'scoped memory for tpu_custom_call.1']
    #allocation4 [shape = 's32[1]{0}', space=sflag, size = 0x4, scoped, tag = 'scoped memory for tpu_custom_call.1']
    #allocation5 [shape = 'u8[4096]{0}', space=vmem, size = 0x1000, scoped, tag = 'output window, operand 0, single buffered']
    %10 = vsyncpa [#allocation3], 0
    %11 = vsyncpa [#allocation4], 0
    // Predicated region
    $region2: #{tpu_custom_call.1} parent=1 // pred_check
      _
    $region3: #{tpu_custom_call.1} parent=1 // pred_check_branch
      %13 = sbr.rel (0) target = $region5
    $region4: #{tpu_custom_call.1} parent=1 // pred_region
      _
    $region5: #{tpu_custom_call.1} parent=1 // pred_fallthru
      _
    // Predicated region
    $region6: #{tpu_custom_call.1} parent=1 // pred_check
      _
    $region7: #{tpu_custom_call.1} parent=1 // pred_check_branch
      %15 = sbr.rel (0) target = $region9
    $region8: #{tpu_custom_call.1} parent=1 // pred_region
      %17 = vsyncadd [#allocation3], 0
      %s18 = sshll.u32 %s1, 4
      %s19 = int_to_ptr.hbm [resolvable:$true] %s18
      %s20 = sshll.u32 [#allocation2], 4
      %s21 = int_to_ptr.vmem [resolvable:$true] %s20
      %26 = dma.hbm_to_vmem [thread:$0]  %s19, 384, %s21, [#allocation3], 128, 128, 8
    $region9: #{tpu_custom_call.1} parent=1 // pred_fallthru
      _
    // Predicated region
    $region10: #{tpu_custom_call.1} parent=1 // pred_check
      _
    $region11: #{tpu_custom_call.1} parent=1 // pred_check_branch
      %28 = sbr.rel (0) target = $region13
    $region12: #{tpu_custom_call.1} parent=1 // pred_region
      _
    $region13: #{tpu_custom_call.1} parent=1 // pred_fallthru
      _
    // Predicated region
    $region14: #{tpu_custom_call.1} parent=1 // pred_check
      _
    $region15: #{tpu_custom_call.1} parent=1 // pred_check_branch
      %30 = sbr.rel (0) target = $region17
    $region16: #{tpu_custom_call.1} parent=1 // pred_region
      _
    $region17: #{tpu_custom_call.1} parent=1 // pred_fallthru
      _
    // Predicated region
    $region18: #{tpu_custom_call.1} parent=1 // pred_check
      _
    $region19: #{tpu_custom_call.1} parent=1 // pred_check_branch
      %32 = sbr.rel (0) target = $region21
    $region20: #{tpu_custom_call.1} parent=1 // pred_region
      _
    $region21: #{tpu_custom_call.1} parent=1 // pred_fallthru
      _
    // Predicated region
    $region22: #{tpu_custom_call.1} parent=1 // pred_check
      _
    $region23: #{tpu_custom_call.1} parent=1 // pred_check_branch
      %34 = sbr.rel (0) target = $region25
    $region24: #{tpu_custom_call.1} parent=1 // pred_region
      %36 = dma.done [#allocation3], 384
    $region25: #{tpu_custom_call.1} parent=1 // pred_fallthru
      _
    %v37 = vld [vmem:[%s0] sm:$0xff]
    %v38 = vld [vmem:[%s4] sm:$0x1]
    %v39 = vld [vmem:[%s4 + $0x1] sm:$0x1]
    %v40 = vld [vmem:[%s4 + $0x2] sm:$0x1]
    %v41 = vld [vmem:[#allocation2] sm:$0xff]
    %v42 = vld [vmem:[#allocation2 + $0x8] sm:$0xff]
    %v43 = vld [vmem:[#allocation2 + $0x10] sm:$0xff]
    %v44 = vperm.slane %v38, 0
    %vm45 = vcmask 195584
    %v47 = vsel %vm45, %v37, 0
    %49 = vmatpush.msra.mxu0 0.0
    %50 = vmatpush.msra.mxu0 0.0
    %51 = vmatpush.msra.mxu0 0.0
    %52 = vmatpush.msra.mxu0 0.0
    %53 = vmatpush.msra.mxu0 0.0
    %54 = vmatpush.msra.mxu0 0.0
    %55 = vmatpush.msra.mxu0 0.0
    %56 = vmatpush.msra.mxu0 0.0
    %57 = vmatpush.msra.mxu0 0.0
    %58 = vmatpush.msra.mxu0 0.0
    %59 = vmatpush.msra.mxu0 0.0
    %60 = vmatpush.msra.mxu0 0.0
    %61 = vmatpush.msra.mxu0 0.0
    %62 = vmatpush.msra.mxu0 %v43
    %63 = vmatpush.msra.mxu0 %v42
    %64 = vmatpush.msra.mxu0 %v41
    %65 = vmatmul.f32.gmra.mxu0 %v47
    %v66 = vpop.f32.mrf.mxu0
    %v67 = vadd.f32 %v44, %v66
    %68 = vdwg.mxu0
    %v69 = vmax.f32 %v67, 0.0
    %v70 = vld [vmem:[%s2] sm:$0xff]
    %v71 = vld [vmem:[%s2 + $0x8] sm:$0xff]
    %v72 = vld [vmem:[%s2 + $0x10] sm:$0xff]
    %v73 = vld [vmem:[%s2 + $0x18] sm:$0xff]
    %v74 = vperm.slane %v39, 0
    %vm75 = vcmask 261120
    %v77 = vsel %vm75, %v69, 0
    %79 = vmatpush.msra.mxu0 0.0
    %80 = vmatpush.msra.mxu0 0.0
    %81 = vmatpush.msra.mxu0 0.0
    %82 = vmatpush.msra.mxu0 0.0
    %83 = vmatpush.msra.mxu0 0.0
    %84 = vmatpush.msra.mxu0 0.0
    %85 = vmatpush.msra.mxu0 0.0
    %86 = vmatpush.msra.mxu0 0.0
    %87 = vmatpush.msra.mxu0 0.0
    %88 = vmatpush.msra.mxu0 0.0
    %89 = vmatpush.msra.mxu0 0.0
    %90 = vmatpush.msra.mxu0 0.0
    %91 = vmatpush.msra.mxu0 %v73
    %92 = vmatpush.msra.mxu0 %v72
    %93 = vmatpush.msra.mxu0 %v71
    %94 = vmatpush.msra.mxu0 %v70
    %95 = vmatmul.f32.gmra.mxu0 %v77
    %v96 = vpop.f32.mrf.mxu0
    %v97 = vadd.f32 %v74, %v96
    %98 = vdwg.mxu0
    %v99 = vmax.f32 %v97, 0.0
    %v100 = vld [vmem:[%s3] sm:$0xff]
    %v101 = vld [vmem:[%s3 + $0x8] sm:$0xff]
    %v102 = vld [vmem:[%s3 + $0x10] sm:$0xff]
    %v103 = vld [vmem:[%s3 + $0x18] sm:$0xff]
    %v104 = vperm.slane %v40, 0
    %v106 = vsel %vm75, %v99, 0
    %108 = vmatpush.msra.mxu0 0.0
    %109 = vmatpush.msra.mxu0 0.0
    %110 = vmatpush.msra.mxu0 0.0
    %111 = vmatpush.msra.mxu0 0.0
    %112 = vmatpush.msra.mxu0 0.0
    %113 = vmatpush.msra.mxu0 0.0
    %114 = vmatpush.msra.mxu0 0.0
    %115 = vmatpush.msra.mxu0 0.0
    %116 = vmatpush.msra.mxu0 0.0
    %117 = vmatpush.msra.mxu0 0.0
    %118 = vmatpush.msra.mxu0 0.0
    %119 = vmatpush.msra.mxu0 0.0
    %120 = vmatpush.msra.mxu0 %v103
    %121 = vmatpush.msra.mxu0 %v102
    %122 = vmatpush.msra.mxu0 %v101
    %123 = vmatpush.msra.mxu0 %v100
    %124 = vmatmul.f32.gmra.mxu0 %v106
    %v125 = vpop.f32.mrf.mxu0
    %v126 = vadd.f32 %v104, %v125
    %127 = vdwg.mxu0
    %v128 = vadd.f32 %v126, %v37
    %vm129 = vcmask 130048
    %130 = vst.msk [vmem:[#allocation5] sm:$0xff] %vm129, %v128
    // Predicated region
    $region26: #{tpu_custom_call.1} parent=1 // pred_check
      _
    $region27: #{tpu_custom_call.1} parent=1 // pred_check_branch
      %132 = sbr.rel (0) target = $region29
    $region28: #{tpu_custom_call.1} parent=1 // pred_region
      %134 = vsyncadd [#allocation4], 0
      %s136 = sshll.u32 [#allocation5], 4
      %s137 = int_to_ptr.vmem [resolvable:$true] %s136
      %s138 = sshll.u32 %s5, 4
      %s139 = int_to_ptr.hbm [resolvable:$true] %s138
      %141 = dma.vmem_to_hbm [thread:$0]  %s137, 128, %s139, [#allocation4]
    $region29: #{tpu_custom_call.1} parent=1 // pred_fallthru
      _
    // Predicated region
    $region30: #{tpu_custom_call.1} parent=1 // pred_check
      _
    $region31: #{tpu_custom_call.1} parent=1 // pred_check_branch
      %143 = sbr.rel (0) target = $region33
    $region32: #{tpu_custom_call.1} parent=1 // pred_region
      %145 = dma.done [#allocation4], 128
    $region33: #{tpu_custom_call.1} parent=1 // pred_fallthru
      _
    %146 = vsyncpa [#allocation3], 1
    %147 = vsyncpa [#allocation4], 1

</llo_original>
